<compile_context>
chip_gen: v5e
topology: v5e:2x2
jax: 0.10.0
libtpu: 0.0.40
codegen_flags: <defaults>
</compile_context>

<pallas_src>
import jax
import jax.numpy as jnp
from jax.experimental import pallas as pl
from jax.experimental.pallas import tpu as pltpu

_VMEM_LIMIT_BYTES = 32 * 1024 * 1024   # safe on v5e/v6e (128 MiB) and v7x (64 MiB)
_VMEM_BUDGET_BYTES = 24 * 1024 * 1024  # leave ~8 MiB headroom for compiler scratch


def _neg_loss_kernel(in_ref, out_ref, noise_ref, loss_ref):
    inp = in_ref[...].astype(jnp.float32)        # [TB, E]
    out = out_ref[...].astype(jnp.float32)       # [TB, E]
    noise = noise_ref[...].astype(jnp.float32)   # [TB, S, E]  (un-negated)

    def log_sigmoid(x):
        # Stable log(sigmoid(x)) = min(x, 0) - log(1 + exp(-|x|));
        # only exp + log on the EUP (no reciprocal).
        return jnp.minimum(x, 0.0) - jnp.log(1.0 + jnp.exp(-jnp.abs(x)))

    # log_target: per-row dot product of input and output embeddings -> [TB]
    log_target = log_sigmoid(jnp.sum(inp * out, axis=1))

    # bmm(noise.neg(), input.unsqueeze(2)) -> [TB, S]; negation folded into the
    # argument of log_sigmoid instead of negating the [TB,S,E] tile.
    scores = jnp.sum(noise * inp[:, None, :], axis=-1)           # [TB, S]
    sum_log_sampled = jnp.sum(log_sigmoid(-scores), axis=1)      # [TB]

    loss = -(log_target + sum_log_sampled)                       # [TB]
    loss_ref[...] = loss[None, :]                                # (1, TB) lane-dense


def _pick_batch_tile(B, S, E):
    """Largest multiple-of-128 batch tile whose per-step VMEM footprint fits.

    Per batch row the worst-case footprint inside one grid step is:
      * double-buffered input blocks:   2 * 4 * (S*E + 2*E) bytes
      * in-kernel temporaries (broadcast input + product): 2 * 4 * (S*E) bytes
    """
    per_row = 4 * (4 * S * E + 4 * E + 8)
    tb = (_VMEM_BUDGET_BYTES // per_row) // 128 * 128
    tb = max(128, min(int(tb), 1024))
    if B <= tb:
        # Single tile: align to the 8-sublane granule.
        return ((B + 7) // 8) * 8
    return tb


def neg_loss_pallas(in_emb, out_emb, noise_emb):
    """in_emb: [B, E], out_emb: [B, E], noise_emb: [B, S, E] -> loss [B]."""
    B, E = in_emb.shape
    _, S, _ = noise_emb.shape

    TB = _pick_batch_tile(B, S, E)
    num_tiles = pl.cdiv(B, TB)
    B_pad = num_tiles * TB
    if B_pad != B:
        pad = B_pad - B
        in_emb = jnp.pad(in_emb, ((0, pad), (0, 0)))
        out_emb = jnp.pad(out_emb, ((0, pad), (0, 0)))
        noise_emb = jnp.pad(noise_emb, ((0, pad), (0, 0), (0, 0)))

    cost = pl.CostEstimate(
        flops=2 * B_pad * S * E + 2 * B_pad * E,
        transcendentals=2 * B_pad * (S + 1),
        bytes_accessed=4 * (B_pad * S * E + 2 * B_pad * E + B_pad),
    )

    loss = pl.pallas_call(
        _neg_loss_kernel,
        out_shape=jax.ShapeDtypeStruct((1, B_pad), jnp.float32),
        grid=(num_tiles,),
        in_specs=[
            pl.BlockSpec((TB, E), lambda i: (i, 0)),
            pl.BlockSpec((TB, E), lambda i: (i, 0)),
            pl.BlockSpec((TB, S, E), lambda i: (i, 0, 0)),
        ],
        out_specs=pl.BlockSpec((1, TB), lambda i: (0, i)),
        compiler_params=pltpu.CompilerParams(
            dimension_semantics=("parallel",),
            vmem_limit_bytes=_VMEM_LIMIT_BYTES),
        cost_estimate=cost,
    )(in_emb, out_emb, noise_emb)
    return loss[0, :B]


class NEGLossJax:
    """JAX/Pallas re-implementation of the PyTorch NEG_loss module."""

    def __init__(self, num_classes, embed_size, key):
        self.num_classes = num_classes
        self.embed_size = embed_size
        k_out, k_in = jax.random.split(key)
        # Parameter(...).uniform_(-1, 1) for both embedding tables
        self.out_embed = jax.random.uniform(
            k_out, (num_classes, embed_size), jnp.float32, -1.0, 1.0)
        self.in_embed = jax.random.uniform(
            k_in, (num_classes, embed_size), jnp.float32, -1.0, 1.0)

    def __call__(self, input_labels, out_labels, num_sampled, noise_key):
        (batch_size,) = input_labels.shape
        # Embedding lookups (glue, plain JAX gather).
        inp = jnp.take(self.in_embed, input_labels, axis=0)      # [B, E]
        out = jnp.take(self.out_embed, out_labels, axis=0)       # [B, E]
        # torch: Tensor(B, S).uniform_(0, num_classes - 1).long()
        # (deterministic JAX replacement for the in-forward RNG draw; same
        #  truncation quirk: class num_classes-1 is effectively never drawn)
        noise_ids = jax.random.uniform(
            noise_key, (batch_size, num_sampled), jnp.float32,
            0.0, float(self.num_classes - 1)).astype(jnp.int32)
        noise_emb = jnp.take(self.out_embed, noise_ids, axis=0)  # [B, S, E]
        return neg_loss_pallas(inp, out, noise_emb)


if __name__ == "__main__":
    key = jax.random.PRNGKey(0)
    k_params, k_in_lbl, k_out_lbl, k_noise = jax.random.split(key, 4)

    num_classes = 64
    embed_size = 32
    batch_size = 8
    num_sampled = 8

    module = NEGLossJax(num_classes, embed_size, k_params)

    input_labels = jax.random.randint(k_in_lbl, (batch_size,), 0, num_classes,
                                      dtype=jnp.int32)
    out_labels = jax.random.randint(k_out_lbl, (batch_size,), 0, num_classes,
                                    dtype=jnp.int32)

    loss = module(input_labels, out_labels, num_sampled, k_noise)
    loss = jax.block_until_ready(loss)

    # Reference check in plain JAX (same inputs / same noise embeddings).
    inp = jnp.take(module.in_embed, input_labels, axis=0)
    out = jnp.take(module.out_embed, out_labels, axis=0)
    noise_ids = jax.random.uniform(
        k_noise, (batch_size, num_sampled), jnp.float32,
        0.0, float(num_classes - 1)).astype(jnp.int32)
    noise = -jnp.take(module.out_embed, noise_ids, axis=0)
    log_target = jnp.log(jax.nn.sigmoid(jnp.sum(inp * out, axis=1)))
    scores = jnp.einsum('bse,be->bs', noise, inp)
    sum_log_sampled = jnp.sum(jnp.log(jax.nn.sigmoid(scores)), axis=1)
    ref = -(log_target + sum_log_sampled)

    assert loss.shape == (batch_size,)
    assert jnp.allclose(loss, ref, atol=1e-5, rtol=1e-5), (loss, ref)
    print("KERNEL_OK")
</pallas_src>

<mosaic_0001>
module attributes {stable_mosaic.version = 11 : i64} {
  func.func @_neg_loss_kernel(%arg0: i32, %arg1: memref<8x32xf32, #tpu.memory_space<vmem>>, %arg2: memref<8x32xf32, #tpu.memory_space<vmem>>, %arg3: memref<8x8x32xf32, #tpu.memory_space<vmem>>, %arg4: memref<1x8xf32, #tpu.memory_space<vmem>>) attributes {dimension_semantics = [#tpu.dimension_semantics<parallel>], iteration_bounds = array<i64: 1>, scalar_prefetch = 0 : i64, scratch_operands = 0 : i64, tpu.core_type = #tpu.core_type<tc>, window_params = [{transform_indices = @transform_0, window_bounds = array<i64: 8, 32>}, {transform_indices = @transform_1, window_bounds = array<i64: 8, 32>}, {transform_indices = @transform_2, window_bounds = array<i64: 8, 8, 32>}, {transform_indices = @transform_3, window_bounds = array<i64: 1, 8>}]} {
    %c0 = arith.constant 0 : index
    %c0_0 = arith.constant 0 : index
    %0 = vector.load %arg1[%c0, %c0_0] : memref<8x32xf32, #tpu.memory_space<vmem>>, vector<8x32xf32>
    %c0_1 = arith.constant 0 : index
    %c0_2 = arith.constant 0 : index
    %1 = vector.load %arg2[%c0_1, %c0_2] : memref<8x32xf32, #tpu.memory_space<vmem>>, vector<8x32xf32>
    %c0_3 = arith.constant 0 : index
    %c0_4 = arith.constant 0 : index
    %c0_5 = arith.constant 0 : index
    %2 = vector.load %arg3[%c0_3, %c0_4, %c0_5] : memref<8x8x32xf32, #tpu.memory_space<vmem>>, vector<8x8x32xf32>
    %3 = arith.mulf %0, %1 : vector<8x32xf32>
    %cst = arith.constant dense<0.000000e+00> : vector<8xf32>
    %4 = vector.multi_reduction <add>, %3, %cst [1] : vector<8x32xf32> to vector<8xf32>
    %cst_6 = arith.constant 0.000000e+00 : f32
    %5 = vector.broadcast %cst_6 : f32 to vector<8xf32>
    %6 = arith.minimumf %4, %5 : vector<8xf32>
    %7 = math.absf %4 : vector<8xf32>
    %cst_7 = arith.constant 0.000000e+00 : f32
    %8 = vector.broadcast %cst_7 : f32 to vector<8xf32>
    %9 = arith.subf %8, %7 : vector<8xf32>
    %10 = math.exp %9 : vector<8xf32>
    %cst_8 = arith.constant 1.000000e+00 : f32
    %11 = vector.broadcast %cst_8 : f32 to vector<8xf32>
    %12 = arith.addf %11, %10 : vector<8xf32>
    %13 = math.log %12 : vector<8xf32>
    %14 = arith.subf %6, %13 : vector<8xf32>
    %15 = vector.shape_cast %0 : vector<8x32xf32> to vector<8x1x32xf32>
    %16 = vector.broadcast %15 : vector<8x1x32xf32> to vector<8x8x32xf32>
    %17 = arith.mulf %2, %16 : vector<8x8x32xf32>
    %cst_9 = arith.constant dense<0.000000e+00> : vector<8x8xf32>
    %18 = vector.multi_reduction <add>, %17, %cst_9 [2] : vector<8x8x32xf32> to vector<8x8xf32>
    %cst_10 = arith.constant 0.000000e+00 : f32
    %19 = vector.broadcast %cst_10 : f32 to vector<8x8xf32>
    %20 = arith.subf %19, %18 : vector<8x8xf32>
    %cst_11 = arith.constant 0.000000e+00 : f32
    %21 = vector.broadcast %cst_11 : f32 to vector<8x8xf32>
    %22 = arith.minimumf %20, %21 : vector<8x8xf32>
    %23 = math.absf %20 : vector<8x8xf32>
    %cst_12 = arith.constant 0.000000e+00 : f32
    %24 = vector.broadcast %cst_12 : f32 to vector<8x8xf32>
    %25 = arith.subf %24, %23 : vector<8x8xf32>
    %26 = math.exp %25 : vector<8x8xf32>
    %cst_13 = arith.constant 1.000000e+00 : f32
    %27 = vector.broadcast %cst_13 : f32 to vector<8x8xf32>
    %28 = arith.addf %27, %26 : vector<8x8xf32>
    %29 = math.log %28 : vector<8x8xf32>
    %30 = arith.subf %22, %29 : vector<8x8xf32>
    %cst_14 = arith.constant dense<0.000000e+00> : vector<8xf32>
    %31 = vector.multi_reduction <add>, %30, %cst_14 [1] : vector<8x8xf32> to vector<8xf32>
    %32 = arith.addf %14, %31 : vector<8xf32>
    %cst_15 = arith.constant 0.000000e+00 : f32
    %33 = vector.broadcast %cst_15 : f32 to vector<8xf32>
    %34 = arith.subf %33, %32 : vector<8xf32>
    %35 = vector.shape_cast %34 : vector<8xf32> to vector<1x8xf32>
    %c0_16 = arith.constant 0 : index
    %c0_17 = arith.constant 0 : index
    %36 = vector.load %arg4[%c0_16, %c0_17] : memref<1x8xf32, #tpu.memory_space<vmem>>, vector<1x8xf32>
    tpu.vector_store %arg4[%c0_16, %c0_17], %35 {strides = array<i32>} : memref<1x8xf32, #tpu.memory_space<vmem>>, vector<1x8xf32>,
    return
  }
  func.func @transform_0(%arg0: i32) -> (i32, i32) {
    %c0_i32 = arith.constant 0 : i32
    %c0_i32_0 = arith.constant 0 : i32
    return %arg0, %c0_i32 : i32, i32
  }
  func.func @transform_1(%arg0: i32) -> (i32, i32) {
    %c0_i32 = arith.constant 0 : i32
    %c0_i32_0 = arith.constant 0 : i32
    return %arg0, %c0_i32 : i32, i32
  }
  func.func @transform_2(%arg0: i32) -> (i32, i32, i32) {
    %c0_i32 = arith.constant 0 : i32
    %c0_i32_0 = arith.constant 0 : i32
    %c0_i32_1 = arith.constant 0 : i32
    return %arg0, %c0_i32, %c0_i32_0 : i32, i32, i32
  }
  func.func @transform_3(%arg0: i32) -> (i32, i32) {
    %c0_i32 = arith.constant 0 : i32
    %c0_i32_0 = arith.constant 0 : i32
    return %c0_i32, %arg0 : i32, i32
  }
}

</mosaic_0001>

<llo_original>
// kernel: tpu_custom_call.1
$region0: #{tpu_custom_call.1}
  #allocation0 [shape = 'u32[]', space=smem, size = 0x4, offset = 0x4, fixed_abs, tag = 'smem constant byte address 0x4 - core index']
  #allocation1 [shape = 'u32[72,128]{1,0:T(1,128)}', space=vmem, size = 0x9000, scoped, tag = 'internal scratch']
  %s0 = inlined_call_operand.hbm [shape: f32[8,32], index: 0, kind: input, shape index: {}]
  %s1 = inlined_call_operand.hbm [shape: f32[8,32], index: 1, kind: input, shape index: {}]
  %s2 = inlined_call_operand.hbm [shape: f32[8,8,32], index: 2, kind: input, shape index: {}]
  %s3 = inlined_call_operand.hbm [shape: f32[1,8], index: 3, kind: output, shape index: {}]
  %s4 = sld [smem:[#allocation0]]
  $region34: #{tpu_custom_call.1} parent=0
    _
  %s6 = ssub.s32 1, %s4
  %s7 = scalar_select 0, %s6, %s4
  $region1: #{tpu_custom_call.1} parent=0
    #allocation2 [shape = 'u8[4096]{0}', space=vmem, size = 0x1000, scoped, tag = 'input window, operand 0, single buffered']
    #allocation3 [shape = 's32[1]{0}', space=sflag, size = 0x4, scoped, tag = 'scoped memory for tpu_custom_call.1']
    #allocation4 [shape = 's32[1]{0}', space=sflag, size = 0x4, scoped, tag = 'scoped memory for tpu_custom_call.1']
    #allocation5 [shape = 'u8[4096]{0}', space=vmem, size = 0x1000, scoped, tag = 'input window, operand 1, single buffered']
    #allocation6 [shape = 's32[1]{0}', space=sflag, size = 0x4, scoped, tag = 'scoped memory for tpu_custom_call.1']
    #allocation7 [shape = 'u8[32768]{0}', space=vmem, size = 0x8000, scoped, tag = 'input window, operand 2, single buffered']
    #allocation8 [shape = 'u8[512]{0}', space=vmem, size = 0x400, scoped, tag = 'output window, operand 0, single buffered']
    %8 = vsyncpa [#allocation3], 0
    %9 = vsyncpa [#allocation6], 0
    %10 = vsyncpa [#allocation4], 0
    // Predicated region
    $region2: #{tpu_custom_call.1} parent=1 // pred_check
      _
    $region3: #{tpu_custom_call.1} parent=1 // pred_check_branch
      %12 = sbr.rel (0) target = $region5
    $region4: #{tpu_custom_call.1} parent=1 // pred_region
      %14 = vsyncadd [#allocation3], 0
      %s16 = sshll.u32 %s0, 4
      %s17 = int_to_ptr.hbm [resolvable:$true] %s16
      %s18 = sshll.u32 [#allocation2], 4
      %s19 = int_to_ptr.vmem [resolvable:$true] %s18
      %21 = dma.hbm_to_vmem [thread:$0]  %s17, 128, %s19, [#allocation3]
    $region5: #{tpu_custom_call.1} parent=1 // pred_fallthru
      _
    // Predicated region
    $region6: #{tpu_custom_call.1} parent=1 // pred_check
      _
    $region7: #{tpu_custom_call.1} parent=1 // pred_check_branch
      %23 = sbr.rel (0) target = $region9
    $region8: #{tpu_custom_call.1} parent=1 // pred_region
      %25 = vsyncadd [#allocation6], 0
      %s27 = sshll.u32 %s1, 4
      %s28 = int_to_ptr.hbm [resolvable:$true] %s27
      %s29 = sshll.u32 [#allocation5], 4
      %s30 = int_to_ptr.vmem [resolvable:$true] %s29
      %32 = dma.hbm_to_vmem [thread:$0]  %s28, 128, %s30, [#allocation6]
    $region9: #{tpu_custom_call.1} parent=1 // pred_fallthru
      _
    // Predicated region
    $region10: #{tpu_custom_call.1} parent=1 // pred_check
      _
    $region11: #{tpu_custom_call.1} parent=1 // pred_check_branch
      %34 = sbr.rel (0) target = $region13
    $region12: #{tpu_custom_call.1} parent=1 // pred_region
      %36 = vsyncadd [#allocation6], 0
      %s37 = sshll.u32 %s2, 4
      %s38 = int_to_ptr.hbm [resolvable:$true] %s37
      %s39 = sshll.u32 [#allocation7], 4
      %s40 = int_to_ptr.vmem [resolvable:$true] %s39
      %45 = dma.hbm_to_vmem [thread:$0]  %s38, 1024, %s40, [#allocation6], 128, 128, 8
    $region13: #{tpu_custom_call.1} parent=1 // pred_fallthru
      _
    // Predicated region
    $region14: #{tpu_custom_call.1} parent=1 // pred_check
      _
    $region15: #{tpu_custom_call.1} parent=1 // pred_check_branch
      %47 = sbr.rel (0) target = $region17
    $region16: #{tpu_custom_call.1} parent=1 // pred_region
      %49 = dma.done [#allocation3], 128
    $region17: #{tpu_custom_call.1} parent=1 // pred_fallthru
      _
    // Predicated region
    $region18: #{tpu_custom_call.1} parent=1 // pred_check
      _
    $region19: #{tpu_custom_call.1} parent=1 // pred_check_branch
      %51 = sbr.rel (0) target = $region21
    $region20: #{tpu_custom_call.1} parent=1 // pred_region
      %53 = dma.done [#allocation6], 128
    $region21: #{tpu_custom_call.1} parent=1 // pred_fallthru
      _
    // Predicated region
    $region22: #{tpu_custom_call.1} parent=1 // pred_check
      _
    $region23: #{tpu_custom_call.1} parent=1 // pred_check_branch
      %55 = sbr.rel (0) target = $region25
    $region24: #{tpu_custom_call.1} parent=1 // pred_region
      %57 = dma.done [#allocation6], 1024
    $region25: #{tpu_custom_call.1} parent=1 // pred_fallthru
      _
    %v58 = vld [vmem:[#allocation2] sm:$0xff]
    %v59 = vld [vmem:[#allocation5] sm:$0xff]
    %v60 = vld [vmem:[#allocation7] sm:$0xff]
    %v61 = vld [vmem:[#allocation7 + $0x8] sm:$0xff]
    %v62 = vld [vmem:[#allocation7 + $0x10] sm:$0xff]
    %v63 = vld [vmem:[#allocation7 + $0x18] sm:$0xff]
    %v64 = vld [vmem:[#allocation7 + $0x20] sm:$0xff]
    %v65 = vld [vmem:[#allocation7 + $0x28] sm:$0xff]
    %v66 = vld [vmem:[#allocation7 + $0x30] sm:$0xff]
    %v67 = vld [vmem:[#allocation7 + $0x38] sm:$0xff]
    %v68 = vmul.f32 %v58, %v59
    %vm69 = vcmask 261120
    %v70 = vsel %vm69, %v68, 0.0
    %71 = vadd.xlane.f32.xlu0 %v70
    %v72 = vpop.xlane.xlu0 %71
    %v73 = vmin.f32 %v72, 0.0
    %v74 = vand.u32 2147483647, %v72
    %v75 = vsub.f32 0.0, %v74
    %v76 = vmul.f32 %v75, 1.442695
    %v77 = vpow.pop %v76
    %v78 = vadd.f32 %v77, 1.0
    %v79 = vlog2.pop %v78
    %v80 = vmul.f32 %v79, 0.6931472
    %v81 = vsub.f32 %v73, %v80
    %v83 = vrot.slane %v58, 1
    %v84 = vrot.slane %v58, 2
    %v85 = vrot.slane %v58, 3
    %v86 = vrot.slane %v58, 4
    %v87 = vrot.slane %v58, 5
    %v88 = vrot.slane %v58, 6
    %v89 = vrot.slane %v58, 7
    %v90 = vperm.slane %v58, 0
    %v91 = vperm.slane %v83, 0
    %v92 = vperm.slane %v84, 0
    %v93 = vperm.slane %v85, 0
    %v94 = vperm.slane %v86, 0
    %v95 = vperm.slane %v87, 0
    %v96 = vperm.slane %v88, 0
    %v97 = vperm.slane %v89, 0
    %v106 = vmul.f32 %v60, %v90
    %v107 = vmul.f32 %v61, %v91
    %v108 = vmul.f32 %v62, %v92
    %v109 = vmul.f32 %v63, %v93
    %v110 = vmul.f32 %v64, %v94
    %v111 = vmul.f32 %v65, %v95
    %v112 = vmul.f32 %v66, %v96
    %v113 = vmul.f32 %v67, %v97
    %v114 = vsel %vm69, %v106, 0.0
    %115 = vadd.xlane.f32.xlu0 %v114
    %v116 = vpop.xlane.xlu0 %115
    %v117 = vsel %vm69, %v107, 0.0
    %118 = vadd.xlane.f32.xlu0 %v117
    %v119 = vpop.xlane.xlu0 %118
    %v120 = vsel %vm69, %v108, 0.0
    %121 = vadd.xlane.f32.xlu0 %v120
    %v122 = vpop.xlane.xlu0 %121
    %v123 = vsel %vm69, %v109, 0.0
    %124 = vadd.xlane.f32.xlu0 %v123
    %v125 = vpop.xlane.xlu0 %124
    %v126 = vsel %vm69, %v110, 0.0
    %127 = vadd.xlane.f32.xlu0 %v126
    %v128 = vpop.xlane.xlu0 %127
    %v129 = vsel %vm69, %v111, 0.0
    %130 = vadd.xlane.f32.xlu0 %v129
    %v131 = vpop.xlane.xlu0 %130
    %v132 = vsel %vm69, %v112, 0.0
    %133 = vadd.xlane.f32.xlu0 %v132
    %v134 = vpop.xlane.xlu0 %133
    %v135 = vsel %vm69, %v113, 0.0
    %136 = vadd.xlane.f32.xlu0 %v135
    %v137 = vpop.xlane.xlu0 %136
    %v138 = vsub.f32 0.0, %v116
    %v139 = vsub.f32 0.0, %v119
    %v140 = vsub.f32 0.0, %v122
    %v141 = vsub.f32 0.0, %v125
    %v142 = vsub.f32 0.0, %v128
    %v143 = vsub.f32 0.0, %v131
    %v144 = vsub.f32 0.0, %v134
    %v145 = vsub.f32 0.0, %v137
    %v146 = vmin.f32 %v138, 0.0
    %v147 = vmin.f32 %v139, 0.0
    %v148 = vmin.f32 %v140, 0.0
    %v149 = vmin.f32 %v141, 0.0
    %v150 = vmin.f32 %v142, 0.0
    %v151 = vmin.f32 %v143, 0.0
    %v152 = vmin.f32 %v144, 0.0
    %v153 = vmin.f32 %v145, 0.0
    %v154 = vand.u32 2147483647, %v138
    %v155 = vand.u32 2147483647, %v139
    %v156 = vand.u32 2147483647, %v140
    %v157 = vand.u32 2147483647, %v141
    %v158 = vand.u32 2147483647, %v142
    %v159 = vand.u32 2147483647, %v143
    %v160 = vand.u32 2147483647, %v144
    %v161 = vand.u32 2147483647, %v145
    %v162 = vsub.f32 0.0, %v154
    %v163 = vsub.f32 0.0, %v155
    %v164 = vsub.f32 0.0, %v156
    %v165 = vsub.f32 0.0, %v157
    %v166 = vsub.f32 0.0, %v158
    %v167 = vsub.f32 0.0, %v159
    %v168 = vsub.f32 0.0, %v160
    %v169 = vsub.f32 0.0, %v161
    %v170 = vmul.f32 %v162, 1.442695
    %v171 = vpow.pop %v170
    %v172 = vmul.f32 %v163, 1.442695
    %v173 = vpow.pop %v172
    %v174 = vmul.f32 %v164, 1.442695
    %v175 = vpow.pop %v174
    %v176 = vmul.f32 %v165, 1.442695
    %v177 = vpow.pop %v176
    %v178 = vmul.f32 %v166, 1.442695
    %v179 = vpow.pop %v178
    %v180 = vmul.f32 %v167, 1.442695
    %v181 = vpow.pop %v180
    %v182 = vmul.f32 %v168, 1.442695
    %v183 = vpow.pop %v182
    %v184 = vmul.f32 %v169, 1.442695
    %v185 = vpow.pop %v184
    %v186 = vadd.f32 %v171, 1.0
    %v187 = vadd.f32 %v173, 1.0
    %v188 = vadd.f32 %v175, 1.0
    %v189 = vadd.f32 %v177, 1.0
    %v190 = vadd.f32 %v179, 1.0
    %v191 = vadd.f32 %v181, 1.0
    %v192 = vadd.f32 %v183, 1.0
    %v193 = vadd.f32 %v185, 1.0
    %v194 = vlog2.pop %v186
    %v195 = vmul.f32 %v194, 0.6931472
    %v196 = vlog2.pop %v187
    %v197 = vmul.f32 %v196, 0.6931472
    %v198 = vlog2.pop %v188
    %v199 = vmul.f32 %v198, 0.6931472
    %v200 = vlog2.pop %v189
    %v201 = vmul.f32 %v200, 0.6931472
    %v202 = vlog2.pop %v190
    %v203 = vmul.f32 %v202, 0.6931472
    %v204 = vlog2.pop %v191
    %v205 = vmul.f32 %v204, 0.6931472
    %v206 = vlog2.pop %v192
    %v207 = vmul.f32 %v206, 0.6931472
    %v208 = vlog2.pop %v193
    %v209 = vmul.f32 %v208, 0.6931472
    %v210 = vsub.f32 %v146, %v195
    %v211 = vsub.f32 %v147, %v197
    %v212 = vsub.f32 %v148, %v199
    %v213 = vsub.f32 %v149, %v201
    %v214 = vsub.f32 %v150, %v203
    %v215 = vsub.f32 %v151, %v205
    %v216 = vsub.f32 %v152, %v207
    %v217 = vsub.f32 %v153, %v209
    %v226 = vlaneseq
    %v227 = vand.u32 %v226, 127
    %v228 = vperm.slane %v210, %v227
    %v229 = vperm.slane %v211, %v227
    %v230 = vperm.slane %v212, %v227
    %v231 = vperm.slane %v213, %v227
    %v232 = vperm.slane %v214, %v227
    %v233 = vperm.slane %v215, %v227
    %v234 = vperm.slane %v216, %v227
    %v235 = vperm.slane %v217, %v227
    %vm236 = vcmask 1041409
    %v237 = vsel %vm236, %v229, %v228
    %vm238 = vcmask 1042434
    %v239 = vsel %vm238, %v230, %v237
    %vm240 = vcmask 1043459
    %v241 = vsel %vm240, %v231, %v239
    %vm242 = vcmask 1044484
    %v243 = vsel %vm242, %v232, %v241
    %vm244 = vcmask 1045509
    %v245 = vsel %vm244, %v233, %v243
    %vm246 = vcmask 1046534
    %v247 = vsel %vm246, %v234, %v245
    %vm248 = vcmask 1047559
    %v249 = vsel %vm248, %v235, %v247
    %vm251 = vcmask 64512
    %v252 = vsel %vm251, %v249, 0.0
    %253 = vadd.xlane.f32.xlu0 %v252
    %v254 = vpop.xlane.xlu0 %253
    %v255 = vadd.f32 %v81, %v254
    %v256 = vsub.f32 0.0, %v255
    %v258 = vperm.slane %v256, %v227
    %vm260 = vcmask 57344
    %261 = vst.msk [vmem:[#allocation8] sm:$0x1] %vm260, %v258
    // Predicated region
    $region26: #{tpu_custom_call.1} parent=1 // pred_check
      _
    $region27: #{tpu_custom_call.1} parent=1 // pred_check_branch
      %263 = sbr.rel (0) target = $region29
    $region28: #{tpu_custom_call.1} parent=1 // pred_region
      %265 = vsyncadd [#allocation4], 0
      %s267 = sshll.u32 [#allocation8], 4
      %s268 = int_to_ptr.vmem [resolvable:$true] %s267
      %s269 = sshll.u32 %s3, 4
      %s270 = int_to_ptr.hbm [resolvable:$true] %s269
      %272 = dma.vmem_to_hbm [thread:$0]  %s268, 16, %s270, [#allocation4]
    $region29: #{tpu_custom_call.1} parent=1 // pred_fallthru
      _
    // Predicated region
    $region30: #{tpu_custom_call.1} parent=1 // pred_check
      _
    $region31: #{tpu_custom_call.1} parent=1 // pred_check_branch
      %274 = sbr.rel (0) target = $region33
    $region32: #{tpu_custom_call.1} parent=1 // pred_region
      %276 = dma.done [#allocation4], 16
    $region33: #{tpu_custom_call.1} parent=1 // pred_fallthru
      _
    %277 = vsyncpa [#allocation3], 1
    %278 = vsyncpa [#allocation6], 1
    %279 = vsyncpa [#allocation4], 1

</llo_original>
